<compile_context>
chip_gen: v5e
topology: v5e:2x2
jax: 0.10.0
libtpu: 0.0.40
codegen_flags: <defaults>
</compile_context>

<pallas_src>
import numpy as np
import jax
import jax.numpy as jnp
from jax import lax
from jax.experimental import pallas as pl
from jax.experimental.pallas import tpu as pltpu


def _pick_tile(n, max_tile, align):
    """Largest divisor of n that is a multiple of `align` and <= max_tile (falls back to n)."""
    if n <= max_tile:
        return n
    t = (max_tile // align) * align
    while t >= align:
        if n % t == 0:
            return t
        t -= align
    return n


def _deconv_phase_kernel(x_ref, w_ref, out_ref, sum_ref, ssq_ref):
    """One (output-phase, batch image, lane tile): dense (Cout,K)@(K,T) matmul on the MXU
    (bf16 operands, f32 accumulation, result kept in vregs), plus per-channel partial
    sum / sum-of-squares for the BatchNorm batch statistics."""
    acc = jnp.dot(w_ref[0], x_ref[0, 0], preferred_element_type=jnp.float32)   # (Cout, T) f32
    out_ref[0, 0] = acc.astype(out_ref.dtype)
    sum_ref[0, 0] = jnp.sum(acc, axis=1, keepdims=True)          # (Cout, 1)
    ssq_ref[0, 0] = jnp.sum(acc * acc, axis=1, keepdims=True)    # (Cout, 1)


def _bn_relu_kernel(x_ref, scale_ref, shift_ref, o_ref):
    """Fused BatchNorm affine (per-row == per-channel scale/shift) + ReLU, f32 math."""
    y = x_ref[...].astype(jnp.float32) * scale_ref[...] + shift_ref[...]
    o_ref[...] = jnp.maximum(y, 0.0)


def deconv_block_forward(x, w_pt, conv_bias, gamma, beta, *, stride=2, padding=1, eps=1e-5):
    """Forward of ConvTranspose2d(k,s,p) -> BatchNorm2d (training stats) -> ReLU.

    x: (B, Cin, H, W) NCHW float32.  w_pt: ConvTranspose2d weight (Cin, Cout, KH, KW).
    conv_bias is accepted for API parity but never enters the computation: a per-channel
    bias is exactly absorbed by the train-mode BatchNorm that follows (it shifts the batch
    mean by the same constant and leaves the variance unchanged).
    """
    del conv_bias  # exactly absorbed by BatchNorm (see docstring)
    B, Cin, H, W = x.shape
    _, Cout, KH, KW = w_pt.shape
    S, P = stride, padding
    assert KH % S == 0 and KW % S == 0 and KH - 2 * P == S and KW - 2 * P == S, (
        "phase decomposition implemented for the module's kernel=4, stride=2, padding=1 family")
    Ho, Wo = (H - 1) * S - 2 * P + KH, (W - 1) * S - 2 * P + KW   # = S*H, S*W
    TH, TW = KH // S, KW // S          # taps per phase per spatial dim (2x2)
    K = TH * TW * Cin                  # dense contraction size per phase
    NPH = S * S                        # number of output phases (4)
    HW = H * W

    # ---- glue: zero-pad the input (NO zero-dilation) and build per-phase im2col patches. ----
    pad_top = (KH // S - 1) - P // S
    pad_bot = (S - 1 + P) // S
    pad_lft = (KW // S - 1) - P // S
    pad_rgt = (S - 1 + P) // S
    x_pad = jnp.pad(x, ((0, 0), (0, 0), (pad_top, pad_bot), (pad_lft, pad_rgt)))

    wnp = np.asarray(w_pt, np.float32)                     # (Cin, Cout, KH, KW)
    phase_patches, phase_weights = [], []
    for rh in range(S):
        for rw in range(S):
            taps = []
            wmat = np.zeros((Cout, K), np.float32)
            t = 0
            for jh in range(TH):
                kh = (rh + P) % S + S * jh
                oh = pad_top + (rh + P) // S - jh          # row offset into padded input
                for jw in range(TW):
                    kw = (rw + P) % S + S * jw
                    ow = pad_lft + (rw + P) // S - jw
                    taps.append(x_pad[:, :, oh:oh + H, ow:ow + W].reshape(B, Cin, HW))
                    wmat[:, t * Cin:(t + 1) * Cin] = wnp[:, :, kh, kw].T   # (Cout, Cin)
                    t += 1
            phase_patches.append(jnp.stack(taps, axis=1).reshape(B, K, HW))
            phase_weights.append(wmat)
    xt = jnp.stack(phase_patches, axis=0).astype(jnp.bfloat16)             # (NPH, B, K, HW)
    wt = jnp.asarray(np.stack(phase_weights, axis=0), jnp.bfloat16)        # (NPH, Cout, K)

    # ---- Pallas kernel 1: per-phase dense matmuls (bf16 MXU, f32 accum) + partial BN stats ----
    T = _pick_tile(HW, 2048, 128)      # lane tile of the output minor dim
    nt = HW // T
    conv4, psum, pssq = pl.pallas_call(
        _deconv_phase_kernel,
        out_shape=(jax.ShapeDtypeStruct((NPH, B, Cout, HW), jnp.bfloat16),
                   jax.ShapeDtypeStruct((NPH, B * nt, Cout, 1), jnp.float32),
                   jax.ShapeDtypeStruct((NPH, B * nt, Cout, 1), jnp.float32)),
        grid=(NPH, B, nt),
        in_specs=[pl.BlockSpec((1, 1, K, T), lambda p, b, t: (p, b, 0, t)),
                  pl.BlockSpec((1, Cout, K), lambda p, b, t: (p, 0, 0))],
        out_specs=(pl.BlockSpec((1, 1, Cout, T), lambda p, b, t: (p, b, 0, t)),
                   pl.BlockSpec((1, 1, Cout, 1), lambda p, b, t: (p, b * nt + t, 0, 0)),
                   pl.BlockSpec((1, 1, Cout, 1), lambda p, b, t: (p, b * nt + t, 0, 0))),
        compiler_params=pltpu.CompilerParams(
            dimension_semantics=("parallel", "parallel", "parallel")),
    )(xt, wt)

    # ---- glue: BatchNorm training-mode batch statistics (biased variance), f32 ----
    n_el = B * Ho * Wo
    ch_sum = jnp.sum(psum, axis=(0, 1))[:, 0]              # (Cout,)
    ch_ssq = jnp.sum(pssq, axis=(0, 1))[:, 0]
    mean = ch_sum / n_el
    # TODO(synk): E[x^2]-E[x]^2 is cancellation-prone for large-mean activations; a two-pass
    # variance (cheap with the per-(phase,batch,tile) partials) would be safer at scale.
    var = ch_ssq / n_el - mean * mean
    inv_std = lax.rsqrt(var + eps)
    scale = gamma.astype(jnp.float32) * inv_std
    shift = beta.astype(jnp.float32) - mean * scale
    # TODO(synk): BatchNorm running_mean/running_var buffer updates are stateful and not modeled
    # here; note that running_mean would include the (otherwise absorbed) conv bias.

    # ---- Pallas kernel 2: fused BN affine + ReLU on a flat lane-dense 2-D view ----
    rows = NPH * B * Cout
    conv2d = conv4.reshape(rows, HW)                       # merge of leading dims (layout no-op)
    scale_col = jnp.tile(scale, NPH * B)[:, None]          # per-row (= per-channel) scale, (rows, 1)
    shift_col = jnp.tile(shift, NPH * B)[:, None]
    R = _pick_tile(rows, 1024, 8)
    Tc = _pick_tile(HW, 8192, 128)
    y2d = pl.pallas_call(
        _bn_relu_kernel,
        out_shape=jax.ShapeDtypeStruct((rows, HW), jnp.float32),
        grid=(rows // R, HW // Tc),
        in_specs=[pl.BlockSpec((R, Tc), lambda i, j: (i, j)),
                  pl.BlockSpec((R, 1), lambda i, j: (i, 0)),
                  pl.BlockSpec((R, 1), lambda i, j: (i, 0))],
        out_specs=pl.BlockSpec((R, Tc), lambda i, j: (i, j)),
        compiler_params=pltpu.CompilerParams(
            dimension_semantics=("parallel", "parallel")),
    )(conv2d, scale_col, shift_col)

    # ---- glue: depth-to-space (phase interleave) back to NCHW ----
    y6 = y2d.reshape(S, S, B, Cout, H, W)
    return jnp.transpose(y6, (2, 3, 4, 0, 5, 1)).reshape(B, Cout, Ho, Wo)


def _reference(x, w_pt, conv_bias, gamma, beta, *, stride=2, padding=1, eps=1e-5):
    k = w_pt.shape[2]
    pad = k - 1 - padding
    w_flip = jnp.transpose(jnp.flip(w_pt, (2, 3)), (1, 0, 2, 3))  # (Cout, Cin, KH, KW)
    conv = lax.conv_general_dilated(
        x, w_flip, window_strides=(1, 1), padding=[(pad, pad), (pad, pad)],
        lhs_dilation=(stride, stride),
        dimension_numbers=('NCHW', 'OIHW', 'NCHW')) + conv_bias[None, :, None, None]
    mean = conv.mean(axis=(0, 2, 3), keepdims=True)
    var = conv.var(axis=(0, 2, 3), keepdims=True)
    bn = (conv - mean) / jnp.sqrt(var + eps) * gamma[None, :, None, None] + beta[None, :, None, None]
    return jnp.maximum(bn, 0.0)


if __name__ == "__main__":
    B, Cin, Cout, H, W = 2, 4, 8, 16, 16
    KH = KW = 4
    key = jax.random.PRNGKey(0)
    k1, k2, k3, k4, k5 = jax.random.split(key, 5)
    x = jax.random.normal(k1, (B, Cin, H, W), jnp.float32)
    # deterministic parameter init (shapes per nn.ConvTranspose2d / nn.BatchNorm2d)
    w_pt = jax.random.normal(k2, (Cin, Cout, KH, KW), jnp.float32) * 0.1
    conv_bias = jax.random.normal(k3, (Cout,), jnp.float32) * 0.1
    gamma = 1.0 + 0.1 * jax.random.normal(k4, (Cout,), jnp.float32)
    beta = 0.1 * jax.random.normal(k5, (Cout,), jnp.float32)

    out = deconv_block_forward(x, w_pt, conv_bias, gamma, beta)
    out = jax.block_until_ready(out)

    ref = _reference(x, w_pt, conv_bias, gamma, beta)
    # bf16 MXU operands + bf16 conv intermediate vs. a pure-f32 reference -> bf16-level tolerance.
    np.testing.assert_allclose(np.asarray(out), np.asarray(ref), rtol=2e-2, atol=2e-2)
    print("KERNEL_OK")
</pallas_src>

<mosaic_0001>
module attributes {stable_mosaic.version = 11 : i64} {
  func.func @_deconv_phase_kernel(%arg0: i32, %arg1: i32, %arg2: i32, %arg3: memref<1x1x16x256xbf16, #tpu.memory_space<vmem>>, %arg4: memref<1x8x16xbf16, #tpu.memory_space<vmem>>, %arg5: memref<1x1x8x256xbf16, #tpu.memory_space<vmem>>, %arg6: memref<1x1x8x1xf32, #tpu.memory_space<vmem>>, %arg7: memref<1x1x8x1xf32, #tpu.memory_space<vmem>>) attributes {dimension_semantics = [#tpu.dimension_semantics<parallel>, #tpu.dimension_semantics<parallel>, #tpu.dimension_semantics<parallel>], iteration_bounds = array<i64: 4, 2, 1>, scalar_prefetch = 0 : i64, scratch_operands = 0 : i64, tpu.core_type = #tpu.core_type<tc>, window_params = [{transform_indices = @transform_0, window_bounds = array<i64: 1, 1, 16, 256>}, {transform_indices = @transform_1, window_bounds = array<i64: 1, 8, 16>}, {transform_indices = @transform_2, window_bounds = array<i64: 1, 1, 8, 256>}, {transform_indices = @transform_3, window_bounds = array<i64: 1, 1, 8, 1>}, {transform_indices = @transform_4, window_bounds = array<i64: 1, 1, 8, 1>}]} {
    %c0 = arith.constant 0 : index
    %c0_0 = arith.constant 0 : index
    %c0_1 = arith.constant 0 : index
    %0 = vector.load %arg4[%c0, %c0_0, %c0_1] : memref<1x8x16xbf16, #tpu.memory_space<vmem>>, vector<1x8x16xbf16>
    %1 = vector.shape_cast %0 : vector<1x8x16xbf16> to vector<8x16xbf16>
    %c0_2 = arith.constant 0 : index
    %c0_3 = arith.constant 0 : index
    %c0_4 = arith.constant 0 : index
    %c0_5 = arith.constant 0 : index
    %2 = vector.load %arg3[%c0_2, %c0_3, %c0_4, %c0_5] : memref<1x1x16x256xbf16, #tpu.memory_space<vmem>>, vector<1x1x16x256xbf16>
    %3 = vector.shape_cast %2 : vector<1x1x16x256xbf16> to vector<16x256xbf16>
    %cst = arith.constant dense<0.000000e+00> : vector<8x256xf32>
    %4 = tpu.matmul %1, %3, %cst {dimension_numbers = #tpu.dot_dimension_numbers<[1], [0], [0], [1], [0, 0, 1, 1], [], []>} : vector<8x16xbf16>, vector<16x256xbf16>, vector<8x256xf32> -> vector<8x256xf32>
    %5 = arith.truncf %4 : vector<8x256xf32> to vector<8x256xbf16>
    %c0_6 = arith.constant 0 : index
    %c0_7 = arith.constant 0 : index
    %c0_8 = arith.constant 0 : index
    %c0_9 = arith.constant 0 : index
    %6 = vector.load %arg5[%c0_6, %c0_7, %c0_8, %c0_9] : memref<1x1x8x256xbf16, #tpu.memory_space<vmem>>, vector<1x1x8x256xbf16>
    %7 = vector.shape_cast %6 : vector<1x1x8x256xbf16> to vector<8x256xbf16>
    %8 = vector.shape_cast %5 : vector<8x256xbf16> to vector<1x1x8x256xbf16>
    tpu.vector_store %arg5[%c0_6, %c0_7, %c0_8, %c0_9], %8 {strides = array<i32>} : memref<1x1x8x256xbf16, #tpu.memory_space<vmem>>, vector<1x1x8x256xbf16>,
    %cst_10 = arith.constant dense<0.000000e+00> : vector<8xf32>
    %9 = vector.multi_reduction <add>, %4, %cst_10 [1] : vector<8x256xf32> to vector<8xf32>
    %10 = vector.shape_cast %9 : vector<8xf32> to vector<8x1xf32>
    %c0_11 = arith.constant 0 : index
    %c0_12 = arith.constant 0 : index
    %c0_13 = arith.constant 0 : index
    %c0_14 = arith.constant 0 : index
    %11 = vector.load %arg6[%c0_11, %c0_12, %c0_13, %c0_14] : memref<1x1x8x1xf32, #tpu.memory_space<vmem>>, vector<1x1x8x1xf32>
    %12 = vector.shape_cast %11 : vector<1x1x8x1xf32> to vector<8x1xf32>
    %13 = vector.shape_cast %10 : vector<8x1xf32> to vector<1x1x8x1xf32>
    tpu.vector_store %arg6[%c0_11, %c0_12, %c0_13, %c0_14], %13 {strides = array<i32>} : memref<1x1x8x1xf32, #tpu.memory_space<vmem>>, vector<1x1x8x1xf32>,
    %14 = arith.mulf %4, %4 : vector<8x256xf32>
    %cst_15 = arith.constant dense<0.000000e+00> : vector<8xf32>
    %15 = vector.multi_reduction <add>, %14, %cst_15 [1] : vector<8x256xf32> to vector<8xf32>
    %16 = vector.shape_cast %15 : vector<8xf32> to vector<8x1xf32>
    %c0_16 = arith.constant 0 : index
    %c0_17 = arith.constant 0 : index
    %c0_18 = arith.constant 0 : index
    %c0_19 = arith.constant 0 : index
    %17 = vector.load %arg7[%c0_16, %c0_17, %c0_18, %c0_19] : memref<1x1x8x1xf32, #tpu.memory_space<vmem>>, vector<1x1x8x1xf32>
    %18 = vector.shape_cast %17 : vector<1x1x8x1xf32> to vector<8x1xf32>
    %19 = vector.shape_cast %16 : vector<8x1xf32> to vector<1x1x8x1xf32>
    tpu.vector_store %arg7[%c0_16, %c0_17, %c0_18, %c0_19], %19 {strides = array<i32>} : memref<1x1x8x1xf32, #tpu.memory_space<vmem>>, vector<1x1x8x1xf32>,
    return
  }
  func.func @transform_0(%arg0: i32, %arg1: i32, %arg2: i32) -> (i32, i32, i32, i32) {
    %c0_i32 = arith.constant 0 : i32
    %c0_i32_0 = arith.constant 0 : i32
    return %arg0, %arg1, %c0_i32, %arg2 : i32, i32, i32, i32
  }
  func.func @transform_1(%arg0: i32, %arg1: i32, %arg2: i32) -> (i32, i32, i32) {
    %c0_i32 = arith.constant 0 : i32
    %c0_i32_0 = arith.constant 0 : i32
    %c0_i32_1 = arith.constant 0 : i32
    return %arg0, %c0_i32, %c0_i32_0 : i32, i32, i32
  }
  func.func @transform_2(%arg0: i32, %arg1: i32, %arg2: i32) -> (i32, i32, i32, i32) {
    %c0_i32 = arith.constant 0 : i32
    %c0_i32_0 = arith.constant 0 : i32
    return %arg0, %arg1, %c0_i32, %arg2 : i32, i32, i32, i32
  }
  func.func @transform_3(%arg0: i32, %arg1: i32, %arg2: i32) -> (i32, i32, i32, i32) {
    %c1_i32 = arith.constant 1 : i32
    %0 = arith.muli %arg1, %c1_i32 : i32
    %1 = arith.addi %0, %arg2 : i32
    %c0_i32 = arith.constant 0 : i32
    %c0_i32_0 = arith.constant 0 : i32
    %c0_i32_1 = arith.constant 0 : i32
    return %arg0, %1, %c0_i32, %c0_i32_0 : i32, i32, i32, i32
  }
  func.func @transform_4(%arg0: i32, %arg1: i32, %arg2: i32) -> (i32, i32, i32, i32) {
    %c1_i32 = arith.constant 1 : i32
    %0 = arith.muli %arg1, %c1_i32 : i32
    %1 = arith.addi %0, %arg2 : i32
    %c0_i32 = arith.constant 0 : i32
    %c0_i32_0 = arith.constant 0 : i32
    %c0_i32_1 = arith.constant 0 : i32
    return %arg0, %1, %c0_i32, %c0_i32_0 : i32, i32, i32, i32
  }
}

</mosaic_0001>

<llo_original>
// kernel: tpu_custom_call.1
$region0: #{tpu_custom_call.1}
  #allocation0 [shape = 'u32[]', space=smem, size = 0x4, offset = 0x4, fixed_abs, tag = 'smem constant byte address 0x4 - core index']
  #allocation1 [shape = 'u32[72,128]{1,0:T(1,128)}', space=vmem, size = 0x9000, scoped, tag = 'internal scratch']
  %s0 = inlined_call_operand.hbm [shape: bf16[4,2,16,256], index: 0, kind: input, shape index: {}]
  %s1 = inlined_call_operand.hbm [shape: bf16[4,8,16], index: 1, kind: input, shape index: {}]
  %s2 = inlined_call_operand.hbm [shape: bf16[4,2,8,256], index: 2, kind: output, shape index: {0}]
  %s3 = inlined_call_operand.vmem [shape: f32[4,2,8,1], index: 3, kind: output, shape index: {1}]
  %s4 = inlined_call_operand.vmem [shape: f32[4,2,8,1], index: 4, kind: output, shape index: {2}]
  %5 = xla_tuple %s2, %s3, %s4
  %s6 = sld [smem:[#allocation0]]
  $region65: #{tpu_custom_call.1} parent=0
    _
  %s8 = ssub.s32 1, %s6
  %s9 = scalar_select 0, %s8, %s6
  $region1: #{tpu_custom_call.1} parent=0
    #allocation2 [shape = 'u8[16384]{0}', space=vmem, size = 0x4000, scoped, tag = 'input window, operand 0']
    #allocation3 [shape = 's32[2]{0}', space=sflag, size = 0x8, scoped, tag = 'scoped memory for tpu_custom_call.1']
    #allocation4 [shape = 's32[2]{0}', space=sflag, size = 0x8, scoped, tag = 'scoped memory for tpu_custom_call.1']
    #allocation5 [shape = 'u8[4096]{0}', space=vmem, size = 0x1000, scoped, tag = 'input window, operand 1']
    #allocation6 [shape = 's32[2]{0}', space=sflag, size = 0x8, scoped, tag = 'scoped memory for tpu_custom_call.1']
    #allocation7 [shape = 'u8[8192]{0}', space=vmem, size = 0x2000, scoped, tag = 'output window, operand 0']
    %10 = vsyncpa [#allocation3], 0
    %s11 = scalar_lea.sflag [#allocation3], 1
    %12 = vsyncpa %s11, 0
    %13 = vsyncpa [#allocation6], 0
    %s14 = scalar_lea.sflag [#allocation6], 1
    %15 = vsyncpa %s14, 0
    %16 = vsyncpa [#allocation4], 0
    %s17 = scalar_lea.sflag [#allocation4], 1
    %18 = vsyncpa %s17, 0
    loop: start=0, step=1, limit=10
    $region2: #{tpu_custom_call.1} parent=1 // loop_pre_header
      _
    $region3: #{tpu_custom_call.1} parent=1 // loop_header
      %s20 = sphi 0, %s24
      %p21 = scmp.ge.s32.totalorder %s20, 10
      %s27 = sphi 0, %s46
      %s28 = sphi 0, %s42
      %s29 = sphi 0, %s38
      %s30 = sphi 0, %s27
      %s31 = sphi 0, %s28
      %s32 = sphi 0, %s29
      %s33 = sphi 0, %s30
      %s34 = sphi 0, %s31
      %s35 = sphi 0, %s32
      %s53 = sphi 0, %s55
      %s56 = sphi 0, %s53
      %s57 = sphi 0, %s56
      %s73 = sphi 0, %s57
      %s79 = sphi 0, %s81
      %s82 = sphi 0, %s79
      %s83 = sphi 0, %s82
      %s99 = sphi 0, %s83
      %s109 = sphi 0, %s111
      %s112 = sphi 0, %s109
      %s113 = sphi 0, %s112
      %s129 = sphi 0, %s113
      %s139 = sphi 0, %s141
      %s142 = sphi 0, %s139
      %s143 = sphi 0, %s142
      %s159 = sphi 0, %s143
      %s169 = sphi 0, %s171
      %s172 = sphi 0, %s169
      %s173 = sphi 0, %s172
      %s189 = sphi 0, %s173
    $region4: #{tpu_custom_call.1} parent=1 // loop_header_branch
      %23 = sbr.rel (%p21) target = $region8
    $region5: #{tpu_custom_call.1} parent=1 // loop_body
      %s25 = ssub.s32 %s20, 1
      %s26 = ssub.s32 %s20, 2
      %s36 = sadd.s32 1, %s29
      %p37 = scmp.ge.s32.totalorder %s36, 1
      %s38 = scalar_select %p37, 0, %s36
      %s39 = sadd.s32 1, %s28
      %s40 = scalar_select %p37, %s39, %s28
      %p41 = scmp.ge.s32.totalorder %s40, 2
      %s42 = scalar_select %p41, 0, %s40
      %s43 = sadd.s32 1, %s27
      %s44 = scalar_select %p41, %s43, %s27
      %p45 = scmp.ge.s32.totalorder %s44, 4
      %s46 = scalar_select %p45, 0, %s44
      %s47 = ssub.s32 %s27, %s46
      %s48 = ssub.s32 %s28, %s42
      %s49 = sor.u32 %s47, %s48
      %s50 = ssub.s32 %s29, %s38
      %s51 = sor.u32 %s49, %s50
      %p52 = scmp.eq.s32.totalorder %s51, 0
      %s54 = sadd.s32 %s53, 1
      %s55 = scalar_select %p52, %s53, %s54
      %p58 = pneg %p52
      %p59 = scmp.eq.s32.totalorder %s20, 7
      %p60 = por %p58, %p59
      %p61 = scmp.ne.s32.totalorder %s53, %s56
      %p62 = scmp.eq.s32.totalorder %s20, 0
      %p63 = por %p61, %p62
      %p64 = scmp.ne.s32.totalorder %s53, %s56
      %p65 = scmp.eq.s32.totalorder %s25, 7
      %p66 = por %p64, %p65
      %p67 = scmp.ne.s32.totalorder %s56, %s57
      %p68 = scmp.eq.s32.totalorder %s25, 0
      %p69 = por %p67, %p68
      %p70 = scmp.ne.s32.totalorder %s56, %s57
      %p71 = scmp.eq.s32.totalorder %s26, 7
      %p72 = por %p70, %p71
      %p74 = scmp.ne.s32.totalorder %s57, %s73
      %p75 = scmp.eq.s32.totalorder %s26, 0
      %p76 = por %p74, %p75
      %s77 = ssub.s32 %s27, %s46
      %p78 = scmp.eq.s32.totalorder %s77, 0
      %s80 = sadd.s32 %s79, 1
      %s81 = scalar_select %p78, %s79, %s80
      %p84 = pneg %p78
      %p85 = scmp.eq.s32.totalorder %s20, 7
      %p86 = por %p84, %p85
      %p87 = scmp.ne.s32.totalorder %s79, %s82
      %p88 = scmp.eq.s32.totalorder %s20, 0
      %p89 = por %p87, %p88
      %p90 = scmp.ne.s32.totalorder %s79, %s82
      %p91 = scmp.eq.s32.totalorder %s25, 7
      %p92 = por %p90, %p91
      %p93 = scmp.ne.s32.totalorder %s82, %s83
      %p94 = scmp.eq.s32.totalorder %s25, 0
      %p95 = por %p93, %p94
      %p96 = scmp.ne.s32.totalorder %s82, %s83
      %p97 = scmp.eq.s32.totalorder %s26, 7
      %p98 = por %p96, %p97
      %p100 = scmp.ne.s32.totalorder %s83, %s99
      %p101 = scmp.eq.s32.totalorder %s26, 0
      %p102 = por %p100, %p101
      %s103 = ssub.s32 %s27, %s46
      %s104 = ssub.s32 %s28, %s42
      %s105 = sor.u32 %s103, %s104
      %s106 = ssub.s32 %s29, %s38
      %s107 = sor.u32 %s105, %s106
      %p108 = scmp.eq.s32.totalorder %s107, 0
      %s110 = sadd.s32 %s109, 1
      %s111 = scalar_select %p108, %s109, %s110
      %p114 = pneg %p108
      %p115 = scmp.eq.s32.totalorder %s20, 7
      %p116 = por %p114, %p115
      %p117 = scmp.ne.s32.totalorder %s109, %s112
      %p118 = scmp.eq.s32.totalorder %s20, 0
      %p119 = por %p117, %p118
      %p120 = scmp.ne.s32.totalorder %s109, %s112
      %p121 = scmp.eq.s32.totalorder %s25, 7
      %p122 = por %p120, %p121
      %p123 = scmp.ne.s32.totalorder %s112, %s113
      %p124 = scmp.eq.s32.totalorder %s25, 0
      %p125 = por %p123, %p124
      %p126 = scmp.ne.s32.totalorder %s112, %s113
      %p127 = scmp.eq.s32.totalorder %s26, 7
      %p128 = por %p126, %p127
      %p130 = scmp.ne.s32.totalorder %s113, %s129
      %p131 = scmp.eq.s32.totalorder %s26, 0
      %p132 = por %p130, %p131
      %s133 = sadd.s32 %s28, %s29
      %s134 = sadd.s32 %s42, %s38
      %s135 = ssub.s32 %s27, %s46
      %s136 = ssub.s32 %s133, %s134
      %s137 = sor.u32 %s135, %s136
      %p138 = scmp.eq.s32.totalorder %s137, 0
      %s140 = sadd.s32 %s139, 1
      %s141 = scalar_select %p138, %s139, %s140
      %p144 = pneg %p138
      %p145 = scmp.eq.s32.totalorder %s20, 7
      %p146 = por %p144, %p145
      %p147 = scmp.ne.s32.totalorder %s139, %s142
      %p148 = scmp.eq.s32.totalorder %s20, 0
      %p149 = por %p147, %p148
      %p150 = scmp.ne.s32.totalorder %s139, %s142
      %p151 = scmp.eq.s32.totalorder %s25, 7
      %p152 = por %p150, %p151
      %p153 = scmp.ne.s32.totalorder %s142, %s143
      %p154 = scmp.eq.s32.totalorder %s25, 0
      %p155 = por %p153, %p154
      %p156 = scmp.ne.s32.totalorder %s142, %s143
      %p157 = scmp.eq.s32.totalorder %s26, 7
      %p158 = por %p156, %p157
      %p160 = scmp.ne.s32.totalorder %s143, %s159
      %p161 = scmp.eq.s32.totalorder %s26, 0
      %p162 = por %p160, %p161
      %s163 = sadd.s32 %s28, %s29
      %s164 = sadd.s32 %s42, %s38
      %s165 = ssub.s32 %s27, %s46
      %s166 = ssub.s32 %s163, %s164
      %s167 = sor.u32 %s165, %s166
      %p168 = scmp.eq.s32.totalorder %s167, 0
      %s170 = sadd.s32 %s169, 1
      %s171 = scalar_select %p168, %s169, %s170
      %p174 = pneg %p168
      %p175 = scmp.eq.s32.totalorder %s20, 7
      %p176 = por %p174, %p175
      %p177 = scmp.ne.s32.totalorder %s169, %s172
      %p178 = scmp.eq.s32.totalorder %s20, 0
      %p179 = por %p177, %p178
      %p180 = scmp.ne.s32.totalorder %s169, %s172
      %p181 = scmp.eq.s32.totalorder %s25, 7
      %p182 = por %p180, %p181
      %p183 = scmp.ne.s32.totalorder %s172, %s173
      %p184 = scmp.eq.s32.totalorder %s25, 0
      %p185 = por %p183, %p184
      %p186 = scmp.ne.s32.totalorder %s172, %s173
      %p187 = scmp.eq.s32.totalorder %s26, 7
      %p188 = por %p186, %p187
      %p190 = scmp.ne.s32.totalorder %s173, %s189
      %p191 = scmp.eq.s32.totalorder %s26, 0
      %p192 = por %p190, %p191
      %p193 = scmp.le.s32.totalorder 1, %s20
      %p194 = scmp.lt.s32.totalorder %s20, 9
      %p195 = pnand %p193, %p194
      %p196 = pneg %p195
      // Predicated region
      $region9: #{tpu_custom_call.1} parent=5 // pred_check
        _
      $region10: #{tpu_custom_call.1} parent=5 // pred_check_branch
        %198 = sbr.rel (%p195) target = $region12
      $region11: #{tpu_custom_call.1} parent=5 // pred_region
        %s199 = ssub.s32 %s20, 1
      $region12: #{tpu_custom_call.1} parent=5 // pred_fallthru
        _
      %p200 = scmp.lt.s32.totalorder %s20, 8
      // Predicated region
      $region13: #{tpu_custom_call.1} parent=5 // pred_check
        %p201 = pneg %p200
      $region14: #{tpu_custom_call.1} parent=5 // pred_check_branch
        %203 = sbr.rel (%p201) target = $region16
      $region15: #{tpu_custom_call.1} parent=5 // pred_region
        // Predicated region
        $region17: #{tpu_custom_call.1} parent=15 // pred_check
          %p204 = pneg %p63
        $region18: #{tpu_custom_call.1} parent=15 // pred_check_branch
          %206 = sbr.rel (%p204) target = $region20
        $region19: #{tpu_custom_call.1} parent=15 // pred_region
          %s207 = sand.u32 %s53, 1
          %s208 = scalar_lea.sflag [#allocation3], %s207
          %s209 = sand.u32 %s53, 1
          %s210 = smul.addr %s209, 16
          %s211 = scalar_lea.vmem [#allocation2], %s210
          %s212 = smul.u32 2, %s29
          %214 = vsyncadd %s208, 0
          %s215 = smul.addr %s28, 4
          %s216 = sadd.s32 %s212, %s215
          %s217 = smul.addr %s27, 8
          %s218 = sadd.s32 %s216, %s217
          %s219 = smul.addr %s218, 4
          %s220 = scalar_lea.hbm %s0, %s219
          %s221 = sshll.u32 %s220, 4
          %s222 = int_to_ptr.hbm [resolvable:$true] %s221
          %s223 = sshll.u32 %s211, 4
          %s224 = int_to_ptr.vmem [resolvable:$true] %s223
          %229 = dma.hbm_to_vmem [thread:$0]  %s222, 256, %s224, %s208, 128, 128, 8
        $region20: #{tpu_custom_call.1} parent=15 // pred_fallthru
          _
        // Predicated region
        $region21: #{tpu_custom_call.1} parent=15 // pred_check
          %p230 = pneg %p89
        $region22: #{tpu_custom_call.1} parent=15 // pred_check_branch
          %232 = sbr.rel (%p230) target = $region24
        $region23: #{tpu_custom_call.1} parent=15 // pred_region
          %s233 = sand.u32 %s79, 1
          %s234 = scalar_lea.sflag [#allocation6], %s233
          %s235 = sand.u32 %s79, 1
          %s236 = smul.addr %s235, 4
          %s237 = scalar_lea.vmem [#allocation5], %s236
          %239 = vsyncadd %s234, 0
          %s240 = smul.addr %s27, 4
          %s241 = scalar_lea.hbm %s1, %s240
          %s243 = sshll.u32 %s241, 4
          %s244 = int_to_ptr.hbm [resolvable:$true] %s243
          %s245 = sshll.u32 %s237, 4
          %s246 = int_to_ptr.vmem [resolvable:$true] %s245
          %248 = dma.hbm_to_vmem [thread:$0]  %s244, 64, %s246, %s234
        $region24: #{tpu_custom_call.1} parent=15 // pred_fallthru
          _
      $region16: #{tpu_custom_call.1} parent=5 // pred_fallthru
        _
      %p249 = scmp.le.s32.totalorder 1, %s20
      %p250 = scmp.lt.s32.totalorder %s20, 9
      %p251 = pnand %p249, %p250
      %p252 = pneg %p251
      // Predicated region
      $region25: #{tpu_custom_call.1} parent=5 // pred_check
        _
      $region26: #{tpu_custom_call.1} parent=5 // pred_check_branch
        %254 = sbr.rel (%p251) target = $region28
      $region27: #{tpu_custom_call.1} parent=5 // pred_region
        %s255 = ssub.s32 %s20, 1
        %s256 = sand.u32 %s56, 1
        %s257 = scalar_lea.sflag [#allocation3], %s256
        %s258 = sand.u32 %s56, 1
        %s259 = smul.addr %s258, 16
        %s260 = scalar_lea.vmem [#allocation2], %s259
        // Predicated region
        $region29: #{tpu_custom_call.1} parent=27 // pred_check
          %p261 = pneg %p69
        $region30: #{tpu_custom_call.1} parent=27 // pred_check_branch
          %263 = sbr.rel (%p261) target = $region32
        $region31: #{tpu_custom_call.1} parent=27 // pred_region
          %265 = dma.done %s257, 256
        $region32: #{tpu_custom_call.1} parent=27 // pred_fallthru
          _
        %s266 = sand.u32 %s82, 1
        %s267 = scalar_lea.sflag [#allocation6], %s266
        %s268 = sand.u32 %s82, 1
        %s269 = smul.addr %s268, 4
        %s270 = scalar_lea.vmem [#allocation5], %s269
        // Predicated region
        $region33: #{tpu_custom_call.1} parent=27 // pred_check
          %p271 = pneg %p95
        $region34: #{tpu_custom_call.1} parent=27 // pred_check_branch
          %273 = sbr.rel (%p271) target = $region36
        $region35: #{tpu_custom_call.1} parent=27 // pred_region
          %275 = dma.done %s267, 64
        $region36: #{tpu_custom_call.1} parent=27 // pred_fallthru
          _
        %s276 = sand.u32 %s56, 1
        %s277 = scalar_lea.sflag [#allocation3], %s276
        %s278 = sand.u32 %s56, 1
        %s279 = smul.addr %s278, 16
        %s280 = scalar_lea.vmem [#allocation2], %s279
        %p281 = pneg %p69
        %p282 = pneg %p66
        %s283 = sand.u32 %s82, 1
        %s284 = scalar_lea.sflag [#allocation6], %s283
        %s285 = sand.u32 %s82, 1
        %s286 = smul.addr %s285, 4
        %s287 = scalar_lea.vmem [#allocation5], %s286
        %p288 = pneg %p95
        %p289 = pneg %p92
        %p290 = pneg %p125
        %p291 = pneg %p122
        %s292 = sand.u32 %s112, 1
        %s293 = scalar_lea.sflag [#allocation4], %s292
        %s294 = sand.u32 %s112, 1
        %s295 = smul.addr %s294, 8
        %s296 = scalar_lea.vmem [#allocation7], %s295
        %p297 = pneg %p155
        %p298 = pneg %p152
        %s299 = sadd.s32 %s31, %s32
        %p300 = scmp.lt.s32.totalorder %s30, 3
        %s301 = scalar_select %p300, %s30, 3
        %p302 = scmp.lt.s32.totalorder %s299, 1
        %s303 = scalar_select %p302, %s299, 1
        %s304 = smul.addr %s301, 2
        %s305 = sadd.s32 %s303, %s304
        %s306 = smul.addr %s305, 8
        %s307 = scalar_lea.vmem %s3, %s306
        %p308 = pneg %p185
        %p309 = pneg %p182
        %s310 = sadd.s32 %s31, %s32
        %p311 = scmp.lt.s32.totalorder %s30, 3
        %s312 = scalar_select %p311, %s30, 3
        %p313 = scmp.lt.s32.totalorder %s310, 1
        %s314 = scalar_select %p313, %s310, 1
        %s315 = smul.addr %s312, 2
        %s316 = sadd.s32 %s314, %s315
        %s317 = smul.addr %s316, 8
        %s318 = scalar_lea.vmem %s4, %s317
        %s319 = smul.u32 2, %s32
        %s320 = smul.u32 2, %s32
        %s321 = sadd.s32 %s31, %s32
        %p322 = scmp.lt.s32.totalorder %s30, 3
        %s323 = scalar_select %p322, %s30, 3
        %p324 = scmp.lt.s32.totalorder %s321, 1
        %s325 = scalar_select %p324, %s321, 1
        %s326 = smul.addr %s323, 2
        %s327 = sadd.s32 %s325, %s326
        %s328 = smul.addr %s327, 8
        %s329 = scalar_lea.vmem %s3, %s328
        %s330 = sadd.s32 %s31, %s32
        %s331 = sadd.s32 %s31, %s32
        %p332 = scmp.lt.s32.totalorder %s30, 3
        %s333 = scalar_select %p332, %s30, 3
        %p334 = scmp.lt.s32.totalorder %s331, 1
        %s335 = scalar_select %p334, %s331, 1
        %s336 = smul.addr %s333, 2
        %s337 = sadd.s32 %s335, %s336
        %s338 = smul.addr %s337, 8
        %s339 = scalar_lea.vmem %s4, %s338
        %s340 = sadd.s32 %s31, %s32
        %v342 = vld [vmem:[%s270] sm:$0xf]
        %v343 = vld [vmem:[%s260] sm:$0xff]
        %v344 = vld [vmem:[%s260 + $0x8] sm:$0xff]
        %v347 = vunpack.c.l.b16 %v343
        %v348 = vunpack.c.h.b16 %v343
        %v349 = vunpack.c.l.b16 %v344
        %v350 = vunpack.c.h.b16 %v344
        %v351 = vpack.c.b16 %v349, %v347
        %v352 = vpack.c.b16 %v350, %v348
        %vm355 = vcmask 130048
        %v357 = vsel %vm355, %v342, 0
        %359 = vmatpush.bf16.msra.mxu0 0
        %360 = vmatpush.bf16.msra.mxu0 0
        %361 = vmatpush.bf16.msra.mxu0 0
        %362 = vmatpush.bf16.msra.mxu0 0
        %363 = vmatpush.bf16.msra.mxu0 0
        %364 = vmatpush.bf16.msra.mxu0 0
        %365 = vmatpush.bf16.msra.mxu0 0
        %366 = vmatpush.bf16.msra.mxu0 %v351
        %367 = vmatmul.bf16.gmra.mxu0 %v357
        %v368 = vpop.f32.mrf.mxu0
        %v369 = vadd.f32 0.0, %v368
        %v370 = vpop.f32.mrf.mxu0
        %371 = vdwg.mxu0
        %372 = vmatpush.bf16.msra.mxu0 0
        %373 = vmatpush.bf16.msra.mxu0 0
        %374 = vmatpush.bf16.msra.mxu0 0
        %375 = vmatpush.bf16.msra.mxu0 0
        %376 = vmatpush.bf16.msra.mxu0 0
        %377 = vmatpush.bf16.msra.mxu0 0
        %378 = vmatpush.bf16.msra.mxu0 0
        %379 = vmatpush.bf16.msra.mxu0 %v352
        %380 = vmatmul.bf16.gmra.mxu0 %v357
        %v381 = vpop.f32.mrf.mxu0
        %v382 = vadd.f32 0.0, %v381
        %v383 = vpop.f32.mrf.mxu0
        %384 = vdwg.mxu0
        %v385 = vpack.c.bf16 %v382, %v369
        %386 = vst [vmem:[%s296] sm:$0xff] %v385
        %v387 = vadd.f32 %v369, %v382
        %388 = vadd.xlane.f32.xlu0 %v387
        %v389 = vpop.xlane.xlu0 %388
        %vm390 = vcmask 7168
        %391 = vst.msk [vmem:[%s329] sm:$0xff] %vm390, %v389
        %v392 = vmul.f32 %v369, %v369
        %v393 = vmul.f32 %v382, %v382
        %v394 = vadd.f32 %v392, %v393
        %395 = vadd.xlane.f32.xlu0 %v394
        %v396 = vpop.xlane.xlu0 %395
        %397 = vst.msk [vmem:[%s339] sm:$0xff] %vm390, %v396
        %s398 = sand.u32 %s112, 1
        %s399 = scalar_lea.sflag [#allocation4], %s398
        %s400 = sand.u32 %s112, 1
        %s401 = smul.addr %s400, 8
        %s402 = scalar_lea.vmem [#allocation7], %s401
        %s403 = sadd.s32 %s31, %s32
        %p404 = scmp.lt.s32.totalorder %s30, 3
        %s405 = scalar_select %p404, %s30, 3
        %p406 = scmp.lt.s32.totalorder %s403, 1
        %s407 = scalar_select %p406, %s403, 1
        %s408 = smul.addr %s405, 2
        %s409 = sadd.s32 %s407, %s408
        %s410 = smul.addr %s409, 8
        %s411 = scalar_lea.vmem %s3, %s410
        %s412 = sadd.s32 %s31, %s32
        %p413 = scmp.lt.s32.totalorder %s30, 3
        %s414 = scalar_select %p413, %s30, 3
        %p415 = scmp.lt.s32.totalorder %s412, 1
        %s416 = scalar_select %p415, %s412, 1
        %s417 = smul.addr %s414, 2
        %s418 = sadd.s32 %s416, %s417
        %s419 = smul.addr %s418, 8
        %s420 = scalar_lea.vmem %s4, %s419
        // Predicated region
        $region37: #{tpu_custom_call.1} parent=27 // pred_check
          %p421 = pneg %p122
        $region38: #{tpu_custom_call.1} parent=27 // pred_check_branch
          %423 = sbr.rel (%p421) target = $region40
        $region39: #{tpu_custom_call.1} parent=27 // pred_region
          %s424 = smul.u32 2, %s32
          %426 = vsyncadd %s399, 0
          %s427 = smul.addr %s31, 2
          %s428 = sadd.s32 %s424, %s427
          %s429 = smul.addr %s30, 4
          %s430 = sadd.s32 %s428, %s429
          %s431 = smul.addr %s430, 4
          %s432 = scalar_lea.hbm %s2, %s431
          %s434 = sshll.u32 %s402, 4
          %s435 = int_to_ptr.vmem [resolvable:$true] %s434
          %s436 = sshll.u32 %s432, 4
          %s437 = int_to_ptr.hbm [resolvable:$true] %s436
          %439 = dma.vmem_to_hbm [thread:$0]  %s435, 128, %s437, %s399
        $region40: #{tpu_custom_call.1} parent=27 // pred_fallthru
          _
        // Predicated region
        $region41: #{tpu_custom_call.1} parent=27 // pred_check
          %p440 = pneg %p152
        $region42: #{tpu_custom_call.1} parent=27 // pred_check_branch
          %442 = sbr.rel (%p440) target = $region44
        $region43: #{tpu_custom_call.1} parent=27 // pred_region
          %s443 = sadd.s32 %s31, %s32
        $region44: #{tpu_custom_call.1} parent=27 // pred_fallthru
          _
        // Predicated region
        $region45: #{tpu_custom_call.1} parent=27 // pred_check
          %p444 = pneg %p182
        $region46: #{tpu_custom_call.1} parent=27 // pred_check_branch
          %446 = sbr.rel (%p444) target = $region48
        $region47: #{tpu_custom_call.1} parent=27 // pred_region
          %s447 = sadd.s32 %s31, %s32
        $region48: #{tpu_custom_call.1} parent=27 // pred_fallthru
          _
      $region28: #{tpu_custom_call.1} parent=5 // pred_fallthru
        _
      %p448 = scmp.le.s32.totalorder 2, %s20
      // Predicated region
      $region49: #{tpu_custom_call.1} parent=5 // pred_check
        %p449 = pneg %p448
      $region50: #{tpu_custom_call.1} parent=5 // pred_check_branch
        %451 = sbr.rel (%p449) target = $region52
      $region51: #{tpu_custom_call.1} parent=5 // pred_region
        %s452 = ssub.s32 %s20, 2
        // Predicated region
        $region53: #{tpu_custom_call.1} parent=51 // pred_check
          %p453 = pneg %p128
        $region54: #{tpu_custom_call.1} parent=51 // pred_check_branch
          %455 = sbr.rel (%p453) target = $region56
        $region55: #{tpu_custom_call.1} parent=51 // pred_region
          %s456 = sand.u32 %s113, 1
          %s457 = scalar_lea.sflag [#allocation4], %s456
          %s458 = sand.u32 %s113, 1
          %s459 = smul.addr %s458, 8
          %s460 = scalar_lea.vmem [#allocation7], %s459
          %462 = dma.done %s457, 128
        $region56: #{tpu_custom_call.1} parent=51 // pred_fallthru
          _
        // Predicated region
        $region57: #{tpu_custom_call.1} parent=51 // pred_check
          %p463 = pneg %p158
        $region58: #{tpu_custom_call.1} parent=51 // pred_check_branch
          %465 = sbr.rel (%p463) target = $region60
        $region59: #{tpu_custom_call.1} parent=51 // pred_region
          %s466 = sadd.s32 %s34, %s35
          %p467 = scmp.lt.s32.totalorder %s33, 3
          %s468 = scalar_select %p467, %s33, 3
          %p469 = scmp.lt.s32.totalorder %s466, 1
          %s470 = scalar_select %p469, %s466, 1
          %s471 = smul.addr %s468, 2
          %s472 = sadd.s32 %s470, %s471
          %s473 = smul.addr %s472, 8
          %s474 = scalar_lea.vmem %s3, %s473
        $region60: #{tpu_custom_call.1} parent=51 // pred_fallthru
          _
        // Predicated region
        $region61: #{tpu_custom_call.1} parent=51 // pred_check
          %p475 = pneg %p188
        $region62: #{tpu_custom_call.1} parent=51 // pred_check_branch
          %477 = sbr.rel (%p475) target = $region64
        $region63: #{tpu_custom_call.1} parent=51 // pred_region
          %s478 = sadd.s32 %s34, %s35
          %p479 = scmp.lt.s32.totalorder %s33, 3
          %s480 = scalar_select %p479, %s33, 3
          %p481 = scmp.lt.s32.totalorder %s478, 1
          %s482 = scalar_select %p481, %s478, 1
          %s483 = smul.addr %s480, 2
          %s484 = sadd.s32 %s482, %s483
          %s485 = smul.addr %s484, 8
          %s486 = scalar_lea.vmem %s4, %s485
        $region64: #{tpu_custom_call.1} parent=51 // pred_fallthru
          _
      $region52: #{tpu_custom_call.1} parent=5 // pred_fallthru
        _
    $region6: #{tpu_custom_call.1} parent=1 // loop_footer
      %s24 = sadd.s32 1, %s20
    $region7: #{tpu_custom_call.1} parent=1 // loop_footer_branch
      %19 = sbr.rel target = $region3
    $region8: #{tpu_custom_call.1} parent=1 // loop_exit
      _
    %487 = vsyncpa [#allocation3], 1
    %s488 = scalar_lea.sflag [#allocation3], 1
    %489 = vsyncpa %s488, 1
    %490 = vsyncpa [#allocation6], 1
    %s491 = scalar_lea.sflag [#allocation6], 1
    %492 = vsyncpa %s491, 1
    %493 = vsyncpa [#allocation4], 1
    %s494 = scalar_lea.sflag [#allocation4], 1
    %495 = vsyncpa %s494, 1

</llo_original>
